<compile_context>
chip_gen: v5e
topology: v5e:2x2
jax: 0.10.0
libtpu: 0.0.40
codegen_flags: <defaults>
</compile_context>

<pallas_src>
import jax
import jax.numpy as jnp
import numpy as np
from jax.experimental import pallas as pl
from jax.experimental.pallas import tpu as pltpu


def _round_up(x, m):
    return (x + m - 1) // m * m


def wav2vec_seq_classification(x, w_feat, b_feat, w_cls, b_cls, *, frame):
    """x: (B, L) waveform. Returns logits (B, C)."""
    B, L = x.shape
    assert L % frame == 0
    T = L // frame
    F = frame
    H = w_feat.shape[1]
    C = w_cls.shape[1]

    # Lane-dim padding only (cheap, weights are tiny); K (=F) is never padded.
    H_pad = _round_up(H, 128)
    C_pad = _round_up(C, 128)

    # Time tile: multiple of 8 sublanes, capped so (frames + f32 h tile +
    # accumulators) x 2 buffers stays well under a 32 MiB scoped-VMEM budget
    # even at real Wav2Vec2 sizes (H=768, T in the thousands).
    TILE_T = min(_round_up(T, 8), 512)
    nk = pl.cdiv(T, TILE_T)
    rem = T % TILE_T  # static: valid rows in the last tile (0 == full tile)

    # Free reshape view of x -- no pad / cast / copy written to HBM.
    frames = x.reshape(B, T, F)

    w_feat_p = jnp.pad(w_feat, ((0, 0), (0, H_pad - H))).astype(jnp.bfloat16)
    b_feat_p = jnp.pad(b_feat.reshape(1, H), ((0, 0), (0, H_pad - H))).astype(jnp.float32)
    w_cls_p = jnp.pad(w_cls, ((0, H_pad - H), (0, C_pad - C))).astype(jnp.bfloat16)
    b_cls_p = jnp.pad(b_cls.reshape(1, C), ((0, 0), (0, C_pad - C))).astype(jnp.float32)

    def kernel(frames_ref, wf_ref, bf_ref, wc_ref, bc_ref, out_ref, pooled_ref):
        # frames_ref: (TILE_T, F) f32     wf_ref: (F, H_pad) bf16
        # bf_ref:     (1, H_pad) f32      wc_ref: (H_pad, C_pad) bf16
        # bc_ref:     (1, C_pad) f32      out_ref: (1, C_pad) f32
        # pooled_ref: (1, H_pad) f32 scratch (running max over time)
        k = pl.program_id(1)
        nk_ = pl.num_programs(1)

        @pl.when(k == 0)
        def _():
            pooled_ref[...] = jnp.full_like(pooled_ref, -jnp.inf)

        # Backbone stand-in: bf16 MXU matmul (unpadded K) + f32 bias + GELU.
        f = frames_ref[...].astype(jnp.bfloat16)
        h = jnp.dot(f, wf_ref[...], preferred_element_type=jnp.float32) + bf_ref[...]
        h = jax.nn.gelu(h, approximate=True)            # (TILE_T, H_pad) f32
        # TODO(synk): on v6e/v7x the GELU + running max could run in bf16 to
        #             halve vreg/VMEM pressure; kept f32 so v5e stays exact.

        # torch.max over time (dim=1) as a streaming accumulator.
        if rem == 0:  # static: every tile is fully valid
            pooled_ref[...] = jnp.maximum(pooled_ref[...],
                                          jnp.max(h, axis=0, keepdims=True))
        else:
            @pl.when(k < nk_ - 1)
            def _():
                pooled_ref[...] = jnp.maximum(pooled_ref[...],
                                              jnp.max(h, axis=0, keepdims=True))

            @pl.when(k == nk_ - 1)
            def _():  # mask only the padded tail rows of the final tile
                row = jax.lax.broadcasted_iota(jnp.int32, (TILE_T, 1), 0)
                hm = jnp.where(row < rem, h, -jnp.inf)
                pooled_ref[...] = jnp.maximum(pooled_ref[...],
                                              jnp.max(hm, axis=0, keepdims=True))

        # Classifier: Dropout(0.2) identity in eval; Linear on the final step.
        @pl.when(k == nk_ - 1)
        def _():
            logits = jnp.dot(pooled_ref[...].astype(jnp.bfloat16), wc_ref[...],
                             preferred_element_type=jnp.float32) + bc_ref[...]
            out_ref[...] = logits                       # lane-dense (1, 128) store

    out = pl.pallas_call(
        kernel,
        out_shape=jax.ShapeDtypeStruct((B, 1, C_pad), jnp.float32),
        grid_spec=pltpu.PrefetchScalarGridSpec(
            num_scalar_prefetch=0,
            grid=(B, nk),
            in_specs=[
                pl.BlockSpec((None, TILE_T, F), lambda i, k: (i, k, 0)),
                pl.BlockSpec((F, H_pad), lambda i, k: (0, 0)),
                pl.BlockSpec((1, H_pad), lambda i, k: (0, 0)),
                pl.BlockSpec((H_pad, C_pad), lambda i, k: (0, 0)),
                pl.BlockSpec((1, C_pad), lambda i, k: (0, 0)),
            ],
            out_specs=pl.BlockSpec((None, 1, C_pad), lambda i, k: (i, 0, 0)),
            scratch_shapes=[pltpu.VMEM((1, H_pad), jnp.float32)],
        ),
        compiler_params=pltpu.CompilerParams(
            dimension_semantics=("parallel", "arbitrary"),
            vmem_limit_bytes=32 * 1024 * 1024,
        ),
    )(frames, w_feat_p, b_feat_p, w_cls_p, b_cls_p)

    return out.reshape(B, C_pad)[:, :C]


def _reference(x, w_feat, b_feat, w_cls, b_cls, *, frame):
    # Same math (incl. bf16 MXU inputs / f32 accumulation) in plain JAX.
    B, L = x.shape
    T = L // frame
    frames = x.reshape(B, T, frame).astype(jnp.bfloat16)
    h = jnp.einsum("btf,fh->bth", frames, w_feat.astype(jnp.bfloat16),
                   preferred_element_type=jnp.float32) + b_feat
    h = jax.nn.gelu(h, approximate=True)                 # (B, T, H)
    pooled = jnp.max(h, axis=1)                          # max over time (dim=1)
    logits = jnp.dot(pooled.astype(jnp.bfloat16), w_cls.astype(jnp.bfloat16),
                     preferred_element_type=jnp.float32) + b_cls
    return logits                                        # Dropout = identity (eval)


if __name__ == "__main__":
    # Small shapes consistent with the module's forward:
    #   batch B=2, raw waveform length L=128, frame F=16 -> T=8 time steps,
    #   hidden_size H=32, num_classes C=16.
    B, L, F, H, C = 2, 128, 16, 32, 16

    key = jax.random.PRNGKey(0)
    kx, kwf, kbf, kwc, kbc = jax.random.split(key, 5)

    x = jax.random.normal(kx, (B, L), dtype=jnp.float32)
    w_feat = jax.random.normal(kwf, (F, H), dtype=jnp.float32) * (1.0 / np.sqrt(F))
    b_feat = jax.random.normal(kbf, (H,), dtype=jnp.float32) * 0.02
    w_cls = jax.random.normal(kwc, (H, C), dtype=jnp.float32) * (1.0 / np.sqrt(H))
    b_cls = jax.random.normal(kbc, (C,), dtype=jnp.float32) * 0.02

    logits = wav2vec_seq_classification(x, w_feat, b_feat, w_cls, b_cls, frame=F)
    logits = jax.block_until_ready(logits)

    ref = _reference(x, w_feat, b_feat, w_cls, b_cls, frame=F)
    np.testing.assert_allclose(np.asarray(logits), np.asarray(ref),
                               rtol=1e-4, atol=1e-4)

    assert logits.shape == (B, C)
    print("KERNEL_OK")
</pallas_src>

<mosaic_0001>
module attributes {stable_mosaic.version = 11 : i64} {
  func.func @kernel(%arg0: i32, %arg1: i32, %arg2: memref<1x8x16xf32, #tpu.memory_space<vmem>>, %arg3: memref<16x128xbf16, #tpu.memory_space<vmem>>, %arg4: memref<1x128xf32, #tpu.memory_space<vmem>>, %arg5: memref<128x128xbf16, #tpu.memory_space<vmem>>, %arg6: memref<1x128xf32, #tpu.memory_space<vmem>>, %arg7: memref<1x1x128xf32, #tpu.memory_space<vmem>>, %arg8: memref<1x128xf32, #tpu.memory_space<vmem>>) attributes {dimension_semantics = [#tpu.dimension_semantics<parallel>, #tpu.dimension_semantics<arbitrary>], iteration_bounds = array<i64: 2, 1>, scalar_prefetch = 0 : i64, scratch_operands = 1 : i64, tpu.core_type = #tpu.core_type<tc>, window_params = [{transform_indices = @transform_0, window_bounds = array<i64: 1, 8, 16>}, {pipeline_mode = #tpu.pipeline_mode<synchronous>, transform_indices = @transform_1, window_bounds = array<i64: 16, 128>}, {pipeline_mode = #tpu.pipeline_mode<synchronous>, transform_indices = @transform_2, window_bounds = array<i64: 1, 128>}, {pipeline_mode = #tpu.pipeline_mode<synchronous>, transform_indices = @transform_3, window_bounds = array<i64: 128, 128>}, {pipeline_mode = #tpu.pipeline_mode<synchronous>, transform_indices = @transform_4, window_bounds = array<i64: 1, 128>}, {transform_indices = @transform_5, window_bounds = array<i64: 1, 1, 128>}]} {
    %c0_i32 = arith.constant 0 : i32
    %0 = arith.cmpi eq, %arg1, %c0_i32 : i32
    %1 = arith.extui %0 : i1 to i32
    %c0_i32_0 = arith.constant 0 : i32
    %2 = arith.cmpi ne, %1, %c0_i32_0 : i32
    scf.if %2 {
      %cst_18 = arith.constant 0xFF800000 : f32
      %32 = vector.broadcast %cst_18 : f32 to vector<1x128xf32>
      %c0_19 = arith.constant 0 : index
      %c0_20 = arith.constant 0 : index
      %33 = vector.load %arg8[%c0_19, %c0_20] : memref<1x128xf32, #tpu.memory_space<vmem>>, vector<1x128xf32>
      tpu.vector_store %arg8[%c0_19, %c0_20], %32 {strides = array<i32>} : memref<1x128xf32, #tpu.memory_space<vmem>>, vector<1x128xf32>,
    } else {
    }
    %c0 = arith.constant 0 : index
    %c0_1 = arith.constant 0 : index
    %c0_2 = arith.constant 0 : index
    %3 = vector.load %arg2[%c0, %c0_1, %c0_2] : memref<1x8x16xf32, #tpu.memory_space<vmem>>, vector<1x8x16xf32>
    %4 = vector.shape_cast %3 : vector<1x8x16xf32> to vector<8x16xf32>
    %5 = arith.truncf %4 : vector<8x16xf32> to vector<8x16xbf16>
    %c0_3 = arith.constant 0 : index
    %c0_4 = arith.constant 0 : index
    %6 = vector.load %arg3[%c0_3, %c0_4] : memref<16x128xbf16, #tpu.memory_space<vmem>>, vector<16x128xbf16>
    %cst = arith.constant dense<0.000000e+00> : vector<8x128xf32>
    %7 = tpu.matmul %5, %6, %cst {dimension_numbers = #tpu.dot_dimension_numbers<[1], [0], [0], [1], [0, 0, 1, 1], [], []>} : vector<8x16xbf16>, vector<16x128xbf16>, vector<8x128xf32> -> vector<8x128xf32>
    %c0_5 = arith.constant 0 : index
    %c0_6 = arith.constant 0 : index
    %8 = vector.load %arg4[%c0_5, %c0_6] : memref<1x128xf32, #tpu.memory_space<vmem>>, vector<1x128xf32>
    %9 = vector.broadcast %8 : vector<1x128xf32> to vector<8x128xf32>
    %10 = arith.addf %7, %9 : vector<8x128xf32>
    %11 = arith.mulf %10, %10 : vector<8x128xf32>
    %12 = arith.mulf %10, %11 : vector<8x128xf32>
    %cst_7 = arith.constant 4.471500e-02 : f32
    %13 = vector.broadcast %cst_7 : f32 to vector<8x128xf32>
    %14 = arith.mulf %13, %12 : vector<8x128xf32>
    %15 = arith.addf %10, %14 : vector<8x128xf32>
    %cst_8 = arith.constant 0.797884583 : f32
    %16 = vector.broadcast %cst_8 : f32 to vector<8x128xf32>
    %17 = arith.mulf %16, %15 : vector<8x128xf32>
    %18 = math.tanh %17 : vector<8x128xf32>
    %cst_9 = arith.constant 1.000000e+00 : f32
    %19 = vector.broadcast %cst_9 : f32 to vector<8x128xf32>
    %20 = arith.addf %19, %18 : vector<8x128xf32>
    %cst_10 = arith.constant 5.000000e-01 : f32
    %21 = vector.broadcast %cst_10 : f32 to vector<8x128xf32>
    %22 = arith.mulf %21, %20 : vector<8x128xf32>
    %23 = arith.mulf %10, %22 : vector<8x128xf32>
    %c0_11 = arith.constant 0 : index
    %c0_12 = arith.constant 0 : index
    %24 = vector.load %arg8[%c0_11, %c0_12] : memref<1x128xf32, #tpu.memory_space<vmem>>, vector<1x128xf32>
    %cst_13 = arith.constant dense<0xFF800000> : vector<128xf32>
    %25 = vector.multi_reduction <maximumf>, %23, %cst_13 [0] : vector<8x128xf32> to vector<128xf32>
    %26 = vector.shape_cast %25 : vector<128xf32> to vector<1x128xf32>
    %27 = arith.maximumf %24, %26 : vector<1x128xf32>
    %c0_14 = arith.constant 0 : index
    %c0_15 = arith.constant 0 : index
    %28 = vector.load %arg8[%c0_14, %c0_15] : memref<1x128xf32, #tpu.memory_space<vmem>>, vector<1x128xf32>
    tpu.vector_store %arg8[%c0_14, %c0_15], %27 {strides = array<i32>} : memref<1x128xf32, #tpu.memory_space<vmem>>, vector<1x128xf32>,
    %c0_i32_16 = arith.constant 0 : i32
    %29 = arith.cmpi eq, %arg1, %c0_i32_16 : i32
    %30 = arith.extui %29 : i1 to i32
    %c0_i32_17 = arith.constant 0 : i32
    %31 = arith.cmpi ne, %30, %c0_i32_17 : i32
    scf.if %31 {
      %c0_18 = arith.constant 0 : index
      %c0_19 = arith.constant 0 : index
      %32 = vector.load %arg8[%c0_18, %c0_19] : memref<1x128xf32, #tpu.memory_space<vmem>>, vector<1x128xf32>
      %33 = arith.truncf %32 : vector<1x128xf32> to vector<1x128xbf16>
      %c0_20 = arith.constant 0 : index
      %c0_21 = arith.constant 0 : index
      %34 = vector.load %arg5[%c0_20, %c0_21] : memref<128x128xbf16, #tpu.memory_space<vmem>>, vector<128x128xbf16>
      %cst_22 = arith.constant dense<0.000000e+00> : vector<1x128xf32>
      %35 = tpu.matmul %33, %34, %cst_22 {dimension_numbers = #tpu.dot_dimension_numbers<[1], [0], [0], [1], [0, 0, 1, 1], [], []>} : vector<1x128xbf16>, vector<128x128xbf16>, vector<1x128xf32> -> vector<1x128xf32>
      %c0_23 = arith.constant 0 : index
      %c0_24 = arith.constant 0 : index
      %36 = vector.load %arg6[%c0_23, %c0_24] : memref<1x128xf32, #tpu.memory_space<vmem>>, vector<1x128xf32>
      %37 = arith.addf %35, %36 : vector<1x128xf32>
      %c0_25 = arith.constant 0 : index
      %c0_26 = arith.constant 0 : index
      %c0_27 = arith.constant 0 : index
      %38 = vector.load %arg7[%c0_25, %c0_26, %c0_27] : memref<1x1x128xf32, #tpu.memory_space<vmem>>, vector<1x1x128xf32>
      %39 = vector.shape_cast %38 : vector<1x1x128xf32> to vector<1x128xf32>
      %40 = vector.shape_cast %37 : vector<1x128xf32> to vector<1x1x128xf32>
      tpu.vector_store %arg7[%c0_25, %c0_26, %c0_27], %40 {strides = array<i32>} : memref<1x1x128xf32, #tpu.memory_space<vmem>>, vector<1x1x128xf32>,
    } else {
    }
    return
  }
  func.func @transform_0(%arg0: i32, %arg1: i32) -> (i32, i32, i32) {
    %c0_i32 = arith.constant 0 : i32
    %c0_i32_0 = arith.constant 0 : i32
    return %arg0, %arg1, %c0_i32 : i32, i32, i32
  }
  func.func @transform_1(%arg0: i32, %arg1: i32) -> (i32, i32) {
    %c0_i32 = arith.constant 0 : i32
    %c0_i32_0 = arith.constant 0 : i32
    %c0_i32_1 = arith.constant 0 : i32
    return %c0_i32, %c0_i32_0 : i32, i32
  }
  func.func @transform_2(%arg0: i32, %arg1: i32) -> (i32, i32) {
    %c0_i32 = arith.constant 0 : i32
    %c0_i32_0 = arith.constant 0 : i32
    %c0_i32_1 = arith.constant 0 : i32
    return %c0_i32, %c0_i32_0 : i32, i32
  }
  func.func @transform_3(%arg0: i32, %arg1: i32) -> (i32, i32) {
    %c0_i32 = arith.constant 0 : i32
    %c0_i32_0 = arith.constant 0 : i32
    %c0_i32_1 = arith.constant 0 : i32
    return %c0_i32, %c0_i32_0 : i32, i32
  }
  func.func @transform_4(%arg0: i32, %arg1: i32) -> (i32, i32) {
    %c0_i32 = arith.constant 0 : i32
    %c0_i32_0 = arith.constant 0 : i32
    %c0_i32_1 = arith.constant 0 : i32
    return %c0_i32, %c0_i32_0 : i32, i32
  }
  func.func @transform_5(%arg0: i32, %arg1: i32) -> (i32, i32, i32) {
    %c0_i32 = arith.constant 0 : i32
    %c0_i32_0 = arith.constant 0 : i32
    %c0_i32_1 = arith.constant 0 : i32
    return %arg0, %c0_i32, %c0_i32_0 : i32, i32, i32
  }
}

</mosaic_0001>

<llo_original>
// kernel: tpu_custom_call.1
$region0: #{tpu_custom_call.1}
  #allocation0 [shape = 'u32[]', space=smem, size = 0x4, offset = 0x4, fixed_abs, tag = 'smem constant byte address 0x4 - core index']
  #allocation1 [shape = 'u32[72,128]{1,0:T(1,128)}', space=vmem, size = 0x9000, scoped, tag = 'internal scratch']
  #allocation2 [shape = 'f32[1,128]{1,0:T(1,128)}', space=vmem, size = 0x200, scoped, tag = 'scratch operand']
  %s0 = inlined_call_operand.hbm [shape: f32[2,8,16], index: 0, kind: input, shape index: {}]
  %s1 = inlined_call_operand.hbm [shape: bf16[16,128], index: 1, kind: input, shape index: {}]
  %s2 = inlined_call_operand.vmem [shape: f32[1,128], index: 2, kind: input, shape index: {}]
  %s3 = inlined_call_operand.hbm [shape: bf16[128,128], index: 3, kind: input, shape index: {}]
  %s4 = inlined_call_operand.vmem [shape: f32[1,128], index: 4, kind: input, shape index: {}]
  %s5 = inlined_call_operand.hbm [shape: f32[2,1,128], index: 5, kind: output, shape index: {}]
  %s6 = sld [smem:[#allocation0]]
  $region73: #{tpu_custom_call.1} parent=0
    _
  %s8 = ssub.s32 1, %s6
  %s9 = scalar_select 0, %s8, %s6
  $region1: #{tpu_custom_call.1} parent=0
    #allocation3 [shape = 'u8[8192]{0}', space=vmem, size = 0x2000, scoped, tag = 'input window, operand 0']
    #allocation4 [shape = 's32[2]{0}', space=sflag, size = 0x8, scoped, tag = 'scoped memory for tpu_custom_call.1']
    #allocation5 [shape = 's32[2]{0}', space=sflag, size = 0x8, scoped, tag = 'scoped memory for tpu_custom_call.1']
    #allocation6 [shape = 'u8[4096]{0}', space=vmem, size = 0x1000, scoped, tag = 'input window, operand 1, single buffered']
    #allocation7 [shape = 's32[1]{0}', space=sflag, size = 0x4, scoped, tag = 'scoped memory for tpu_custom_call.1']
    #allocation8 [shape = 'u8[32768]{0}', space=vmem, size = 0x8000, scoped, tag = 'input window, operand 3, single buffered']
    #allocation9 [shape = 'u8[1024]{0}', space=vmem, size = 0x400, scoped, tag = 'output window, operand 0']
    %10 = vsyncpa [#allocation4], 0
    %s11 = scalar_lea.sflag [#allocation4], 1
    %12 = vsyncpa %s11, 0
    %13 = vsyncpa [#allocation7], 0
    %14 = vsyncpa [#allocation5], 0
    %s15 = scalar_lea.sflag [#allocation5], 1
    %16 = vsyncpa %s15, 0
    loop: start=0, step=1, limit=4
    $region2: #{tpu_custom_call.1} parent=1 // loop_pre_header
      _
    $region3: #{tpu_custom_call.1} parent=1 // loop_header
      %s18 = sphi 0, %s22
      %p19 = scmp.ge.s32.totalorder %s18, 4
      %s25 = sphi 0, %s37
      %s26 = sphi 0, %s33
      %s27 = sphi 0, %s25
      %s28 = sphi 0, %s26
      %s29 = sphi 0, %s27
      %s30 = sphi 0, %s28
      %s42 = sphi 0, %s44
      %s45 = sphi 0, %s42
      %s46 = sphi 0, %s45
      %s62 = sphi 0, %s46
      %s66 = sphi 0, %s66
      %s68 = sphi 0, %s66
      %s69 = sphi 0, %s68
      %s83 = sphi 0, %s69
      %s87 = sphi 0, %s87
      %s89 = sphi 0, %s87
      %s90 = sphi 0, %s89
      %s104 = sphi 0, %s90
      %s108 = sphi 0, %s108
      %s110 = sphi 0, %s108
      %s111 = sphi 0, %s110
      %s125 = sphi 0, %s111
      %s129 = sphi 0, %s129
      %s131 = sphi 0, %s129
      %s132 = sphi 0, %s131
      %s146 = sphi 0, %s132
      %s152 = sphi 0, %s154
      %s155 = sphi 0, %s152
      %s156 = sphi 0, %s155
      %s172 = sphi 0, %s156
    $region4: #{tpu_custom_call.1} parent=1 // loop_header_branch
      %21 = sbr.rel (%p19) target = $region8
    $region5: #{tpu_custom_call.1} parent=1 // loop_body
      %s23 = ssub.s32 %s18, 1
      %s24 = ssub.s32 %s18, 2
      %s31 = sadd.s32 1, %s26
      %p32 = scmp.ge.s32.totalorder %s31, 1
      %s33 = scalar_select %p32, 0, %s31
      %s34 = sadd.s32 1, %s25
      %s35 = scalar_select %p32, %s34, %s25
      %p36 = scmp.ge.s32.totalorder %s35, 2
      %s37 = scalar_select %p36, 0, %s35
      %s38 = ssub.s32 %s25, %s37
      %s39 = ssub.s32 %s26, %s33
      %s40 = sor.u32 %s38, %s39
      %p41 = scmp.eq.s32.totalorder %s40, 0
      %s43 = sadd.s32 %s42, 1
      %s44 = scalar_select %p41, %s42, %s43
      %p47 = pneg %p41
      %p48 = scmp.eq.s32.totalorder %s18, 1
      %p49 = por %p47, %p48
      %p50 = scmp.ne.s32.totalorder %s42, %s45
      %p51 = scmp.eq.s32.totalorder %s18, 0
      %p52 = por %p50, %p51
      %p53 = scmp.ne.s32.totalorder %s42, %s45
      %p54 = scmp.eq.s32.totalorder %s23, 1
      %p55 = por %p53, %p54
      %p56 = scmp.ne.s32.totalorder %s45, %s46
      %p57 = scmp.eq.s32.totalorder %s23, 0
      %p58 = por %p56, %p57
      %p59 = scmp.ne.s32.totalorder %s45, %s46
      %p60 = scmp.eq.s32.totalorder %s24, 1
      %p61 = por %p59, %p60
      %p63 = scmp.ne.s32.totalorder %s46, %s62
      %p64 = scmp.eq.s32.totalorder %s24, 0
      %p65 = por %p63, %p64
      %s67 = sadd.s32 %s66, 1
      %p70 = scmp.eq.s32.totalorder %s18, 1
      %p71 = scmp.ne.s32.totalorder %s66, %s68
      %p72 = scmp.eq.s32.totalorder %s18, 0
      %p73 = por %p71, %p72
      %p74 = scmp.ne.s32.totalorder %s66, %s68
      %p75 = scmp.eq.s32.totalorder %s23, 1
      %p76 = por %p74, %p75
      %p77 = scmp.ne.s32.totalorder %s68, %s69
      %p78 = scmp.eq.s32.totalorder %s23, 0
      %p79 = por %p77, %p78
      %p80 = scmp.ne.s32.totalorder %s68, %s69
      %p81 = scmp.eq.s32.totalorder %s24, 1
      %p82 = por %p80, %p81
      %p84 = scmp.ne.s32.totalorder %s69, %s83
      %p85 = scmp.eq.s32.totalorder %s24, 0
      %p86 = por %p84, %p85
      %s88 = sadd.s32 %s87, 1
      %p91 = scmp.eq.s32.totalorder %s18, 1
      %p92 = scmp.ne.s32.totalorder %s87, %s89
      %p93 = scmp.eq.s32.totalorder %s18, 0
      %p94 = por %p92, %p93
      %p95 = scmp.ne.s32.totalorder %s87, %s89
      %p96 = scmp.eq.s32.totalorder %s23, 1
      %p97 = por %p95, %p96
      %p98 = scmp.ne.s32.totalorder %s89, %s90
      %p99 = scmp.eq.s32.totalorder %s23, 0
      %p100 = por %p98, %p99
      %p101 = scmp.ne.s32.totalorder %s89, %s90
      %p102 = scmp.eq.s32.totalorder %s24, 1
      %p103 = por %p101, %p102
      %p105 = scmp.ne.s32.totalorder %s90, %s104
      %p106 = scmp.eq.s32.totalorder %s24, 0
      %p107 = por %p105, %p106
      %s109 = sadd.s32 %s108, 1
      %p112 = scmp.eq.s32.totalorder %s18, 1
      %p113 = scmp.ne.s32.totalorder %s108, %s110
      %p114 = scmp.eq.s32.totalorder %s18, 0
      %p115 = por %p113, %p114
      %p116 = scmp.ne.s32.totalorder %s108, %s110
      %p117 = scmp.eq.s32.totalorder %s23, 1
      %p118 = por %p116, %p117
      %p119 = scmp.ne.s32.totalorder %s110, %s111
      %p120 = scmp.eq.s32.totalorder %s23, 0
      %p121 = por %p119, %p120
      %p122 = scmp.ne.s32.totalorder %s110, %s111
      %p123 = scmp.eq.s32.totalorder %s24, 1
      %p124 = por %p122, %p123
      %p126 = scmp.ne.s32.totalorder %s111, %s125
      %p127 = scmp.eq.s32.totalorder %s24, 0
      %p128 = por %p126, %p127
      %s130 = sadd.s32 %s129, 1
      %p133 = scmp.eq.s32.totalorder %s18, 1
      %p134 = scmp.ne.s32.totalorder %s129, %s131
      %p135 = scmp.eq.s32.totalorder %s18, 0
      %p136 = por %p134, %p135
      %p137 = scmp.ne.s32.totalorder %s129, %s131
      %p138 = scmp.eq.s32.totalorder %s23, 1
      %p139 = por %p137, %p138
      %p140 = scmp.ne.s32.totalorder %s131, %s132
      %p141 = scmp.eq.s32.totalorder %s23, 0
      %p142 = por %p140, %p141
      %p143 = scmp.ne.s32.totalorder %s131, %s132
      %p144 = scmp.eq.s32.totalorder %s24, 1
      %p145 = por %p143, %p144
      %p147 = scmp.ne.s32.totalorder %s132, %s146
      %p148 = scmp.eq.s32.totalorder %s24, 0
      %p149 = por %p147, %p148
      %s150 = ssub.s32 %s25, %s37
      %p151 = scmp.eq.s32.totalorder %s150, 0
      %s153 = sadd.s32 %s152, 1
      %s154 = scalar_select %p151, %s152, %s153
      %p157 = pneg %p151
      %p158 = scmp.eq.s32.totalorder %s18, 1
      %p159 = por %p157, %p158
      %p160 = scmp.ne.s32.totalorder %s152, %s155
      %p161 = scmp.eq.s32.totalorder %s18, 0
      %p162 = por %p160, %p161
      %p163 = scmp.ne.s32.totalorder %s152, %s155
      %p164 = scmp.eq.s32.totalorder %s23, 1
      %p165 = por %p163, %p164
      %p166 = scmp.ne.s32.totalorder %s155, %s156
      %p167 = scmp.eq.s32.totalorder %s23, 0
      %p168 = por %p166, %p167
      %p169 = scmp.ne.s32.totalorder %s155, %s156
      %p170 = scmp.eq.s32.totalorder %s24, 1
      %p171 = por %p169, %p170
      %p173 = scmp.ne.s32.totalorder %s156, %s172
      %p174 = scmp.eq.s32.totalorder %s24, 0
      %p175 = por %p173, %p174
      %p176 = scmp.le.s32.totalorder 1, %s18
      %p177 = scmp.lt.s32.totalorder %s18, 3
      %p178 = pnand %p176, %p177
      %p179 = pneg %p178
      // Predicated region
      $region9: #{tpu_custom_call.1} parent=5 // pred_check
        _
      $region10: #{tpu_custom_call.1} parent=5 // pred_check_branch
        %181 = sbr.rel (%p178) target = $region12
      $region11: #{tpu_custom_call.1} parent=5 // pred_region
        %s182 = ssub.s32 %s18, 1
        // Predicated region
        $region13: #{tpu_custom_call.1} parent=11 // pred_check
          %p183 = pneg %p79
        $region14: #{tpu_custom_call.1} parent=11 // pred_check_branch
          %185 = sbr.rel (%p183) target = $region16
        $region15: #{tpu_custom_call.1} parent=11 // pred_region
          %187 = vsyncadd [#allocation7], 0
          %s188 = sshll.u32 %s1, 4
          %s189 = int_to_ptr.hbm [resolvable:$true] %s188
          %s190 = sshll.u32 [#allocation6], 4
          %s191 = int_to_ptr.vmem [resolvable:$true] %s190
          %196 = dma.hbm_to_vmem [thread:$0]  %s189, 128, %s191, [#allocation7], 64, 64, 4
        $region16: #{tpu_custom_call.1} parent=11 // pred_fallthru
          _
        // Predicated region
        $region17: #{tpu_custom_call.1} parent=11 // pred_check
          %p197 = pneg %p100
        $region18: #{tpu_custom_call.1} parent=11 // pred_check_branch
          %199 = sbr.rel (%p197) target = $region20
        $region19: #{tpu_custom_call.1} parent=11 // pred_region
          _
        $region20: #{tpu_custom_call.1} parent=11 // pred_fallthru
          _
        // Predicated region
        $region21: #{tpu_custom_call.1} parent=11 // pred_check
          %p200 = pneg %p121
        $region22: #{tpu_custom_call.1} parent=11 // pred_check_branch
          %202 = sbr.rel (%p200) target = $region24
        $region23: #{tpu_custom_call.1} parent=11 // pred_region
          %204 = vsyncadd [#allocation7], 0
          %s205 = sshll.u32 %s3, 4
          %s206 = int_to_ptr.hbm [resolvable:$true] %s205
          %s207 = sshll.u32 [#allocation8], 4
          %s208 = int_to_ptr.vmem [resolvable:$true] %s207
          %213 = dma.hbm_to_vmem [thread:$0]  %s206, 1024, %s208, [#allocation7], 64, 64, 4
        $region24: #{tpu_custom_call.1} parent=11 // pred_fallthru
          _
        // Predicated region
        $region25: #{tpu_custom_call.1} parent=11 // pred_check
          %p214 = pneg %p142
        $region26: #{tpu_custom_call.1} parent=11 // pred_check_branch
          %216 = sbr.rel (%p214) target = $region28
        $region27: #{tpu_custom_call.1} parent=11 // pred_region
          _
        $region28: #{tpu_custom_call.1} parent=11 // pred_fallthru
          _
      $region12: #{tpu_custom_call.1} parent=5 // pred_fallthru
        _
      %p217 = scmp.lt.s32.totalorder %s18, 2
      // Predicated region
      $region29: #{tpu_custom_call.1} parent=5 // pred_check
        %p218 = pneg %p217
      $region30: #{tpu_custom_call.1} parent=5 // pred_check_branch
        %220 = sbr.rel (%p218) target = $region32
      $region31: #{tpu_custom_call.1} parent=5 // pred_region
        // Predicated region
        $region33: #{tpu_custom_call.1} parent=31 // pred_check
          %p221 = pneg %p52
        $region34: #{tpu_custom_call.1} parent=31 // pred_check_branch
          %223 = sbr.rel (%p221) target = $region36
        $region35: #{tpu_custom_call.1} parent=31 // pred_region
          %s224 = sand.u32 %s42, 1
          %s225 = scalar_lea.sflag [#allocation4], %s224
          %s226 = sand.u32 %s42, 1
          %s227 = smul.addr %s226, 8
          %s228 = scalar_lea.vmem [#allocation3], %s227
          %230 = vsyncadd %s225, 0
          %s231 = sadd.s32 %s26, %s25
          %s232 = smul.addr %s231, 8
          %s233 = scalar_lea.hbm %s0, %s232
          %s235 = sshll.u32 %s233, 4
          %s236 = int_to_ptr.hbm [resolvable:$true] %s235
          %s237 = sshll.u32 %s228, 4
          %s238 = int_to_ptr.vmem [resolvable:$true] %s237
          %240 = dma.hbm_to_vmem [thread:$0]  %s236, 128, %s238, %s225
        $region36: #{tpu_custom_call.1} parent=31 // pred_fallthru
          _
      $region32: #{tpu_custom_call.1} parent=5 // pred_fallthru
        _
      %p241 = scmp.le.s32.totalorder 1, %s18
      %p242 = scmp.lt.s32.totalorder %s18, 3
      %p243 = pnand %p241, %p242
      %p244 = pneg %p243
      // Predicated region
      $region37: #{tpu_custom_call.1} parent=5 // pred_check
        _
      $region38: #{tpu_custom_call.1} parent=5 // pred_check_branch
        %246 = sbr.rel (%p243) target = $region40
      $region39: #{tpu_custom_call.1} parent=5 // pred_region
        %s247 = ssub.s32 %s18, 1
        %s248 = sand.u32 %s45, 1
        %s249 = scalar_lea.sflag [#allocation4], %s248
        %s250 = sand.u32 %s45, 1
        %s251 = smul.addr %s250, 8
        %s252 = scalar_lea.vmem [#allocation3], %s251
        // Predicated region
        $region41: #{tpu_custom_call.1} parent=39 // pred_check
          %p253 = pneg %p58
        $region42: #{tpu_custom_call.1} parent=39 // pred_check_branch
          %255 = sbr.rel (%p253) target = $region44
        $region43: #{tpu_custom_call.1} parent=39 // pred_region
          %257 = dma.done %s249, 128
        $region44: #{tpu_custom_call.1} parent=39 // pred_fallthru
          _
        // Predicated region
        $region45: #{tpu_custom_call.1} parent=39 // pred_check
          %p258 = pneg %p79
        $region46: #{tpu_custom_call.1} parent=39 // pred_check_branch
          %260 = sbr.rel (%p258) target = $region48
        $region47: #{tpu_custom_call.1} parent=39 // pred_region
          %262 = dma.done [#allocation7], 128
        $region48: #{tpu_custom_call.1} parent=39 // pred_fallthru
          _
        // Predicated region
        $region49: #{tpu_custom_call.1} parent=39 // pred_check
          %p263 = pneg %p121
        $region50: #{tpu_custom_call.1} parent=39 // pred_check_branch
          %265 = sbr.rel (%p263) target = $region52
        $region51: #{tpu_custom_call.1} parent=39 // pred_region
          %267 = dma.done [#allocation7], 1024
        $region52: #{tpu_custom_call.1} parent=39 // pred_fallthru
          _
        %s268 = sand.u32 %s45, 1
        %s269 = scalar_lea.sflag [#allocation4], %s268
        %s270 = sand.u32 %s45, 1
        %s271 = smul.addr %s270, 8
        %s272 = scalar_lea.vmem [#allocation3], %s271
        %p273 = pneg %p58
        %p274 = pneg %p55
        %p275 = pneg %p79
        %p276 = pneg %p76
        %p277 = pneg %p100
        %p278 = pneg %p97
        %p279 = pneg %p121
        %p280 = pneg %p118
        %p281 = pneg %p142
        %p282 = pneg %p139
        %p283 = pneg %p168
        %p284 = pneg %p165
        %s285 = sand.u32 %s155, 1
        %s286 = scalar_lea.sflag [#allocation5], %s285
        %s287 = sand.u32 %s155, 1
        %s288 = scalar_lea.vmem [#allocation9], %s287
        %p290 = scmp.eq.s32.totalorder %s28, 0
        // Predicated region
        $region53: #{tpu_custom_call.1} parent=39 // pred_check
          %p291 = pneg %p290
        $region54: #{tpu_custom_call.1} parent=39 // pred_check_branch
          %293 = sbr.rel (%p291) target = $region56
        $region55: #{tpu_custom_call.1} parent=39 // pred_region
          %294 = vst [vmem:[#allocation2] sm:$0x1] -inf
        $region56: #{tpu_custom_call.1} parent=39 // pred_fallthru
          _
        %v295 = vld [vmem:[%s252] sm:$0xff]
        %v296 = vpack.c.bf16 %v295, %v295
        %v297 = vld [vmem:[#allocation6] sm:$0xf]
        %v298 = vld [vmem:[#allocation6 + $0x4] sm:$0xf]
        %v299 = vld [vmem:[%s2] sm:$0x1]
        %v301 = vperm.slane %v299, 0
        %v305 = vunpack.c.l.b16 %v297
        %v306 = vunpack.c.l.b16 %v298
        %v307 = vpack.c.b16 %v306, %v305
        %vm309 = vcmask 130048
        %v311 = vsel %vm309, %v296, 0
        %313 = vmatpush.bf16.msra.mxu0 0
        %314 = vmatpush.bf16.msra.mxu0 0
        %315 = vmatpush.bf16.msra.mxu0 0
        %316 = vmatpush.bf16.msra.mxu0 0
        %317 = vmatpush.bf16.msra.mxu0 0
        %318 = vmatpush.bf16.msra.mxu0 0
        %319 = vmatpush.bf16.msra.mxu0 0
        %320 = vmatpush.bf16.msra.mxu0 %v307
        %321 = vmatmul.bf16.gmra.mxu0 %v311
        %v322 = vpop.f32.mrf.mxu0
        %v323 = vadd.f32 %v301, %v322
        %v324 = vpop.f32.mrf.mxu0
        %325 = vdwg.mxu0
        %v326 = vmul.f32 %v323, %v323
        %v327 = vmul.f32 %v323, %v326
        %v328 = vmul.f32 %v327, 0.044715
        %v329 = vadd.f32 %v323, %v328
        %v330 = vmul.f32 %v329, 0.7978846
        %v331 = vtanh.pop %v330
        %v332 = vadd.f32 %v331, 1.0
        %v333 = vmul.f32 %v332, 0.5
        %v334 = vmul.f32 %v323, %v333
        %v335 = vld [vmem:[#allocation2] sm:$0x1]
        %v336 = vrot.slane %v334, 4
        %v337 = vmax.f32 %v334, %v336
        %v338 = vrot.slane %v337, 2
        %v339 = vmax.f32 %v337, %v338
        %v340 = vrot.slane %v339, 1
        %v341 = vmax.f32 %v339, %v340
        %v342 = vmax.f32 %v335, %v341
        %343 = vst [vmem:[#allocation2] sm:$0x1] %v342
        // Predicated region
        $region57: #{tpu_custom_call.1} parent=39 // pred_check
          %p344 = pneg %p290
        $region58: #{tpu_custom_call.1} parent=39 // pred_check_branch
          %346 = sbr.rel (%p344) target = $region60
        $region59: #{tpu_custom_call.1} parent=39 // pred_region
          %v347 = vld [vmem:[#allocation2] sm:$0x1]
          %v348 = vpack.c.bf16 %v347, %v347
          %v349 = vld [vmem:[#allocation8] sm:$0xf]
          %v350 = vld [vmem:[#allocation8 + $0x4] sm:$0xf]
          %v351 = vld [vmem:[#allocation8 + $0x8] sm:$0xf]
          %v352 = vld [vmem:[#allocation8 + $0xc] sm:$0xf]
          %v353 = vld [vmem:[#allocation8 + $0x10] sm:$0xf]
          %v354 = vld [vmem:[#allocation8 + $0x14] sm:$0xf]
          %v355 = vld [vmem:[#allocation8 + $0x18] sm:$0xf]
          %v356 = vld [vmem:[#allocation8 + $0x1c] sm:$0xf]
          %v357 = vld [vmem:[#allocation8 + $0x20] sm:$0xf]
          %v358 = vld [vmem:[#allocation8 + $0x24] sm:$0xf]
          %v359 = vld [vmem:[#allocation8 + $0x28] sm:$0xf]
          %v360 = vld [vmem:[#allocation8 + $0x2c] sm:$0xf]
          %v361 = vld [vmem:[#allocation8 + $0x30] sm:$0xf]
          %v362 = vld [vmem:[#allocation8 + $0x34] sm:$0xf]
          %v363 = vld [vmem:[#allocation8 + $0x38] sm:$0xf]
          %v364 = vld [vmem:[#allocation8 + $0x3c] sm:$0xf]
          %v365 = vld [vmem:[%s4] sm:$0x1]
          %v382 = vunpack.c.l.b16 %v349
          %v383 = vunpack.c.l.b16 %v350
          %v384 = vunpack.c.l.b16 %v351
          %v385 = vunpack.c.l.b16 %v352
          %v386 = vunpack.c.l.b16 %v353
          %v387 = vunpack.c.l.b16 %v354
          %v388 = vunpack.c.l.b16 %v355
          %v389 = vunpack.c.l.b16 %v356
          %v390 = vunpack.c.l.b16 %v357
          %v391 = vunpack.c.l.b16 %v358
          %v392 = vunpack.c.l.b16 %v359
          %v393 = vunpack.c.l.b16 %v360
          %v394 = vunpack.c.l.b16 %v361
          %v395 = vunpack.c.l.b16 %v362
          %v396 = vunpack.c.l.b16 %v363
          %v397 = vunpack.c.l.b16 %v364
          %v398 = vpack.c.b16 %v383, %v382
          %v399 = vpack.c.b16 %v385, %v384
          %v400 = vpack.c.b16 %v387, %v386
          %v401 = vpack.c.b16 %v389, %v388
          %v402 = vpack.c.b16 %v391, %v390
          %v403 = vpack.c.b16 %v393, %v392
          %v404 = vpack.c.b16 %v395, %v394
          %v405 = vpack.c.b16 %v397, %v396
          %414 = vmatpush.bf16.msra.mxu0 %v405
          %415 = vmatpush.bf16.msra.mxu0 %v404
          %416 = vmatpush.bf16.msra.mxu0 %v403
          %417 = vmatpush.bf16.msra.mxu0 %v402
          %418 = vmatpush.bf16.msra.mxu0 %v401
          %419 = vmatpush.bf16.msra.mxu0 %v400
          %420 = vmatpush.bf16.msra.mxu0 %v399
          %421 = vmatpush.bf16.msra.mxu0 %v398
          %422 = vmatmul.bf16.gmra.mxu0 %v348
          %v423 = vpop.f32.mrf.mxu0
          %v424 = vadd.f32 %v365, %v423
          %v425 = vpop.f32.mrf.mxu0
          %426 = vdwg.mxu0
          %427 = vst [vmem:[%s288] sm:$0x1] %v424
        $region60: #{tpu_custom_call.1} parent=39 // pred_fallthru
          _
        %s428 = sand.u32 %s155, 1
        %s429 = scalar_lea.sflag [#allocation5], %s428
        %s430 = sand.u32 %s155, 1
        %s431 = scalar_lea.vmem [#allocation9], %s430
        // Predicated region
        $region61: #{tpu_custom_call.1} parent=39 // pred_check
          %p432 = pneg %p165
        $region62: #{tpu_custom_call.1} parent=39 // pred_check_branch
          %434 = sbr.rel (%p432) target = $region64
        $region63: #{tpu_custom_call.1} parent=39 // pred_region
          %436 = vsyncadd %s429, 0
          %s437 = scalar_lea.hbm %s5, %s27
          %s439 = sshll.u32 %s431, 4
          %s440 = int_to_ptr.vmem [resolvable:$true] %s439
          %s441 = sshll.u32 %s437, 4
          %s442 = int_to_ptr.hbm [resolvable:$true] %s441
          %444 = dma.vmem_to_hbm [thread:$0]  %s440, 16, %s442, %s429
        $region64: #{tpu_custom_call.1} parent=39 // pred_fallthru
          _
      $region40: #{tpu_custom_call.1} parent=5 // pred_fallthru
        _
      %p445 = scmp.le.s32.totalorder 2, %s18
      // Predicated region
      $region65: #{tpu_custom_call.1} parent=5 // pred_check
        %p446 = pneg %p445
      $region66: #{tpu_custom_call.1} parent=5 // pred_check_branch
        %448 = sbr.rel (%p446) target = $region68
      $region67: #{tpu_custom_call.1} parent=5 // pred_region
        %s449 = ssub.s32 %s18, 2
        // Predicated region
        $region69: #{tpu_custom_call.1} parent=67 // pred_check
          %p450 = pneg %p171
        $region70: #{tpu_custom_call.1} parent=67 // pred_check_branch
          %452 = sbr.rel (%p450) target = $region72
        $region71: #{tpu_custom_call.1} parent=67 // pred_region
          %s453 = sand.u32 %s156, 1
          %s454 = scalar_lea.sflag [#allocation5], %s453
          %s455 = sand.u32 %s156, 1
          %s456 = scalar_lea.vmem [#allocation9], %s455
          %458 = dma.done %s454, 16
        $region72: #{tpu_custom_call.1} parent=67 // pred_fallthru
          _
      $region68: #{tpu_custom_call.1} parent=5 // pred_fallthru
        _
    $region6: #{tpu_custom_call.1} parent=1 // loop_footer
      %s22 = sadd.s32 1, %s18
    $region7: #{tpu_custom_call.1} parent=1 // loop_footer_branch
      %17 = sbr.rel target = $region3
    $region8: #{tpu_custom_call.1} parent=1 // loop_exit
      _
    %459 = vsyncpa [#allocation4], 1
    %s460 = scalar_lea.sflag [#allocation4], 1
    %461 = vsyncpa %s460, 1
    %462 = vsyncpa [#allocation7], 1
    %463 = vsyncpa [#allocation5], 1
    %s464 = scalar_lea.sflag [#allocation5], 1
    %465 = vsyncpa %s464, 1

</llo_original>
